<compile_context>
chip_gen: v5e
topology: v5e:2x2
jax: 0.10.0
libtpu: 0.0.40
codegen_flags: <defaults>
</compile_context>

<pallas_src>
import functools

import jax
import jax.numpy as jnp
from jax.experimental import pallas as pl
from jax.experimental.pallas import tpu as pltpu


def _round_up(x, m):
    return ((x + m - 1) // m) * m


def _mlp_kernel(x_ref, w1_ref, b1_ref, w2_ref, b2_ref, o_ref, *, apply_sigmoid):
    # x:  (TB, P)  bf16   batch tile (streamed / double-buffered)
    # w1: (H, P)   bf16   torch layout [out, in]; VMEM-resident
    # b1: (H, 1)   f32    column; VMEM-resident
    # w2: (H, 1)   f32    column; VMEM-resident
    # b2: (1, 1)   f32    scalar in SMEM
    # o:  (1, TB)  f32    lane-dense row of per-sample outputs
    #
    # First Linear on the MXU, transposed-rhs form: (H,P) . (TB,P)^T -> (H, TB), f32 acc.
    h = jax.lax.dot_general(
        w1_ref[...], x_ref[...],
        dimension_numbers=(((1,), (1,)), ((), ())),
        preferred_element_type=jnp.float32,
    )
    # Bias (lane-broadcast of an (H,1) column) + ReLU, all f32 on the VPU.
    h = jnp.maximum(h + b1_ref[...], 0.0)
    # Second Linear (out_features=1): VPU multiply + sublane reduction -> (1, TB) row.
    y = jnp.sum(h * w2_ref[...], axis=0, keepdims=True) + b2_ref[0, 0]
    if apply_sigmoid:                      # 'class' head; 'energy' head skips the sigmoid
        y = jax.nn.sigmoid(y)              # EUP transcendental, off the VALU critical path
    o_ref[...] = y.astype(o_ref.dtype)


def simple_nn_forward(x, w1, b1, w2, b2, *, net_type="class"):
    """Forward pass of SimpleNN.

    x : [B, PY, PX] (or [B, C, PY, PX]) -- flattened row-major like nn.Flatten.
    w1: [512, PX*PY]  torch nn.Linear weight layout [out_features, in_features]
    b1: [512]
    w2: [1, 512] (or [512])
    b2: [1] (or scalar)
    Returns [B, 1] float32.
    """
    if net_type not in ("class", "energy"):
        raise ValueError("Invalid output class")

    B = x.shape[0]
    H, P = w1.shape
    x2d = x.reshape(B, P)

    # --- batch tiling -------------------------------------------------------
    TB = 1024                                   # rows per grid step for large batches
    if B <= TB:
        TB = max(128, _round_up(B, 128))        # tiny batches: one padded tile
    B_pad = _round_up(B, TB)                    # TB multiple of 128 -> lane-dense output row
    if B_pad != B:
        x2d = jnp.pad(x2d, ((0, B_pad - B), (0, 0)))
    n_tiles = B_pad // TB

    # --- operand prep (dtypes / layouts) -------------------------------------
    x_bf = x2d.astype(jnp.bfloat16)             # halves HBM traffic for the streamed operand
    w1_bf = w1.astype(jnp.bfloat16)             # VMEM-resident, fetched once
    b1_c = jnp.asarray(b1, jnp.float32).reshape(H, 1)
    w2_c = jnp.asarray(w2, jnp.float32).reshape(H, 1)
    b2_c = jnp.asarray(b2, jnp.float32).reshape(1, 1)

    kernel = functools.partial(_mlp_kernel, apply_sigmoid=(net_type == "class"))

    # VMEM budget: double-buffered x tile + resident weights/biases + (H, TB) f32
    # intermediate + headroom.
    vmem_bytes = 2 * TB * P * 2 + 2 * H * P * 2 + 4 * H * 128 * 4 + TB * H * 4
    vmem_limit = min(64 * 1024 * 1024, _round_up(vmem_bytes, 1 << 20) + (8 << 20))

    cost = pl.CostEstimate(
        flops=2 * B_pad * P * H + 2 * B_pad * H,
        transcendentals=B_pad if net_type == "class" else 0,
        bytes_accessed=B_pad * P * 2 + H * P * 2 + 2 * H * 4 + B_pad * 4,
    )

    out_row = pl.pallas_call(
        kernel,
        out_shape=jax.ShapeDtypeStruct((1, B_pad), jnp.float32),
        grid_spec=pltpu.PrefetchScalarGridSpec(
            num_scalar_prefetch=0,
            grid=(n_tiles,),
            in_specs=[
                pl.BlockSpec((TB, P), lambda i: (i, 0)),   # x tile: streamed / pipelined
                pl.BlockSpec((H, P), lambda i: (0, 0)),    # w1: VMEM-resident
                pl.BlockSpec((H, 1), lambda i: (0, 0)),    # b1: VMEM-resident
                pl.BlockSpec((H, 1), lambda i: (0, 0)),    # w2: VMEM-resident
                pl.BlockSpec(memory_space=pltpu.MemorySpace.SMEM),  # b2 scalar in SMEM
            ],
            out_specs=pl.BlockSpec((1, TB), lambda i: (0, i)),      # lane-dense output row
        ),
        compiler_params=pltpu.CompilerParams(
            dimension_semantics=("parallel",),
            vmem_limit_bytes=vmem_limit,
        ),
        cost_estimate=cost,
    )(x_bf, w1_bf, b1_c, w2_c, b2_c)

    return out_row[0, :B].reshape(B, 1)


if __name__ == "__main__":
    # Shapes implied by the module: PixelCountX = PixelCountY = 16, hidden = 512, batch = 2.
    B, PY, PX = 2, 16, 16
    P = PX * PY            # 256 -> in_features of the first Linear
    HID = 512

    key = jax.random.PRNGKey(0)
    kx, k1, kb1, k2, kb2 = jax.random.split(key, 5)

    x = jax.random.normal(kx, (B, PY, PX), dtype=jnp.float32)

    # torch-like uniform(-1/sqrt(fan_in), 1/sqrt(fan_in)) init, torch layout [out, in].
    bound1 = 1.0 / (P ** 0.5)
    w1 = jax.random.uniform(k1, (HID, P), jnp.float32, -bound1, bound1)
    b1 = jax.random.uniform(kb1, (HID,), jnp.float32, -bound1, bound1)
    bound2 = 1.0 / (HID ** 0.5)
    w2 = jax.random.uniform(k2, (1, HID), jnp.float32, -bound2, bound2)
    b2 = jax.random.uniform(kb2, (1,), jnp.float32, -bound2, bound2)

    y = simple_nn_forward(x, w1, b1, w2, b2, net_type="class")
    jax.block_until_ready(y)

    # Pure-JAX f32 reference (kernel feeds the first matmul in bf16 -> ~1e-3 abs err).
    x2d = x.reshape(B, P)
    ref = jax.nn.sigmoid(jnp.maximum(x2d @ w1.T + b1, 0.0) @ w2.T + b2)

    assert y.shape == (B, 1)
    assert jnp.allclose(y, ref, atol=1e-2), "mismatch vs reference"

    print("KERNEL_OK")
</pallas_src>

<mosaic_0001>
module attributes {stable_mosaic.version = 11 : i64} {
  func.func @_mlp_kernel(%arg0: i32, %arg1: memref<128x256xbf16, #tpu.memory_space<vmem>>, %arg2: memref<512x256xbf16, #tpu.memory_space<vmem>>, %arg3: memref<512x1xf32, #tpu.memory_space<vmem>>, %arg4: memref<512x1xf32, #tpu.memory_space<vmem>>, %arg5: memref<1x1xf32, #tpu.memory_space<smem>>, %arg6: memref<1x128xf32, #tpu.memory_space<vmem>>) attributes {dimension_semantics = [#tpu.dimension_semantics<parallel>], iteration_bounds = array<i64: 1>, scalar_prefetch = 0 : i64, scratch_operands = 0 : i64, tpu.core_type = #tpu.core_type<tc>, window_params = [{transform_indices = @transform_0, window_bounds = array<i64: 128, 256>}, {pipeline_mode = #tpu.pipeline_mode<synchronous>, transform_indices = @transform_1, window_bounds = array<i64: 512, 256>}, {pipeline_mode = #tpu.pipeline_mode<synchronous>, transform_indices = @transform_2, window_bounds = array<i64: 512, 1>}, {pipeline_mode = #tpu.pipeline_mode<synchronous>, transform_indices = @transform_3, window_bounds = array<i64: 512, 1>}, {transform_indices = @transform_4, window_bounds = array<i64: 1, 1>}, {transform_indices = @transform_5, window_bounds = array<i64: 1, 128>}]} {
    %c0 = arith.constant 0 : index
    %c0_0 = arith.constant 0 : index
    %0 = vector.load %arg2[%c0, %c0_0] : memref<512x256xbf16, #tpu.memory_space<vmem>>, vector<512x256xbf16>
    %c0_1 = arith.constant 0 : index
    %c0_2 = arith.constant 0 : index
    %1 = vector.load %arg1[%c0_1, %c0_2] : memref<128x256xbf16, #tpu.memory_space<vmem>>, vector<128x256xbf16>
    %cst = arith.constant dense<0.000000e+00> : vector<512x128xf32>
    %2 = tpu.matmul %0, %1, %cst {dimension_numbers = #tpu.dot_dimension_numbers<[1], [1], [0], [0], [0, 0, 1, 0], [], []>} : vector<512x256xbf16>, vector<128x256xbf16>, vector<512x128xf32> -> vector<512x128xf32>
    %c0_3 = arith.constant 0 : index
    %c0_4 = arith.constant 0 : index
    %3 = vector.load %arg3[%c0_3, %c0_4] : memref<512x1xf32, #tpu.memory_space<vmem>>, vector<512x1xf32>
    %4 = vector.broadcast %3 : vector<512x1xf32> to vector<512x128xf32>
    %5 = arith.addf %2, %4 : vector<512x128xf32>
    %cst_5 = arith.constant 0.000000e+00 : f32
    %6 = vector.broadcast %cst_5 : f32 to vector<512x128xf32>
    %7 = arith.maximumf %5, %6 : vector<512x128xf32>
    %c0_6 = arith.constant 0 : index
    %c0_7 = arith.constant 0 : index
    %8 = vector.load %arg4[%c0_6, %c0_7] : memref<512x1xf32, #tpu.memory_space<vmem>>, vector<512x1xf32>
    %9 = vector.broadcast %8 : vector<512x1xf32> to vector<512x128xf32>
    %10 = arith.mulf %7, %9 : vector<512x128xf32>
    %cst_8 = arith.constant dense<0.000000e+00> : vector<128xf32>
    %11 = vector.multi_reduction <add>, %10, %cst_8 [0] : vector<512x128xf32> to vector<128xf32>
    %12 = vector.shape_cast %11 : vector<128xf32> to vector<1x128xf32>
    %c0_9 = arith.constant 0 : index
    %c0_10 = arith.constant 0 : index
    %13 = memref.load %arg5[%c0_9, %c0_10] : memref<1x1xf32, #tpu.memory_space<smem>>
    %14 = vector.broadcast %13 : f32 to vector<1x128xf32>
    %15 = arith.addf %12, %14 : vector<1x128xf32>
    %16 = arith.negf %15 : vector<1x128xf32>
    %17 = math.exp %16 : vector<1x128xf32>
    %cst_11 = arith.constant 1.000000e+00 : f32
    %18 = vector.broadcast %cst_11 : f32 to vector<1x128xf32>
    %19 = arith.addf %18, %17 : vector<1x128xf32>
    %20 = arith.divf %18, %19 : vector<1x128xf32>
    %c0_12 = arith.constant 0 : index
    %c0_13 = arith.constant 0 : index
    %21 = vector.load %arg6[%c0_12, %c0_13] : memref<1x128xf32, #tpu.memory_space<vmem>>, vector<1x128xf32>
    tpu.vector_store %arg6[%c0_12, %c0_13], %20 {strides = array<i32>} : memref<1x128xf32, #tpu.memory_space<vmem>>, vector<1x128xf32>,
    return
  }
  func.func @transform_0(%arg0: i32) -> (i32, i32) {
    %c0_i32 = arith.constant 0 : i32
    %c0_i32_0 = arith.constant 0 : i32
    return %arg0, %c0_i32 : i32, i32
  }
  func.func @transform_1(%arg0: i32) -> (i32, i32) {
    %c0_i32 = arith.constant 0 : i32
    %c0_i32_0 = arith.constant 0 : i32
    %c0_i32_1 = arith.constant 0 : i32
    return %c0_i32, %c0_i32_0 : i32, i32
  }
  func.func @transform_2(%arg0: i32) -> (i32, i32) {
    %c0_i32 = arith.constant 0 : i32
    %c0_i32_0 = arith.constant 0 : i32
    %c0_i32_1 = arith.constant 0 : i32
    return %c0_i32, %c0_i32_0 : i32, i32
  }
  func.func @transform_3(%arg0: i32) -> (i32, i32) {
    %c0_i32 = arith.constant 0 : i32
    %c0_i32_0 = arith.constant 0 : i32
    %c0_i32_1 = arith.constant 0 : i32
    return %c0_i32, %c0_i32_0 : i32, i32
  }
  func.func @transform_4(%arg0: i32) -> (i32, i32) {
    %c0_i32 = arith.constant 0 : i32
    %c0_i32_0 = arith.constant 0 : i32
    %c0_i32_1 = arith.constant 0 : i32
    return %c0_i32, %c0_i32_0 : i32, i32
  }
  func.func @transform_5(%arg0: i32) -> (i32, i32) {
    %c0_i32 = arith.constant 0 : i32
    %c0_i32_0 = arith.constant 0 : i32
    return %c0_i32, %arg0 : i32, i32
  }
}

</mosaic_0001>

<llo_original>
// kernel: tpu_custom_call.1
$region0: #{tpu_custom_call.1}
  #allocation0 [shape = 'u32[]', space=smem, size = 0x4, offset = 0x4, fixed_abs, tag = 'smem constant byte address 0x4 - core index']
  #allocation1 [shape = 'u32[72,128]{1,0:T(1,128)}', space=vmem, size = 0x9000, scoped, tag = 'internal scratch']
  #allocation2 [shape = 'f32[1,1]{1,0:T(1,128)S(6)}', space=smem, size = 0x200, scoped, tag = 'scoped memory for tpu_custom_call.1']
  %s0 = inlined_call_operand.vmem [shape: bf16[128,256], index: 0, kind: input, shape index: {}]
  %s1 = inlined_call_operand.vmem [shape: bf16[512,256], index: 1, kind: input, shape index: {}]
  %s2 = inlined_call_operand.vmem [shape: f32[512,1], index: 2, kind: input, shape index: {}]
  %s3 = inlined_call_operand.vmem [shape: f32[512,1], index: 3, kind: input, shape index: {}]
  %s4 = inlined_call_operand.<no memory space> [shape: f32[1,1], index: 4, kind: input, shape index: {}]
  %s5 = inlined_call_operand.hbm [shape: f32[1,128], index: 5, kind: output, shape index: {}]
  %s6 = sld [smem:[#allocation0]]
  $region30: #{tpu_custom_call.1} parent=0
    _
  %s8 = ssub.s32 1, %s6
  %s9 = scalar_select 0, %s8, %s6
  %10 = sst [smem:[#allocation2]] %s4
  $region1: #{tpu_custom_call.1} parent=0
    #allocation3 [shape = 'u8[512]{0}', space=vmem, size = 0x400, scoped, tag = 'output window, operand 0, single buffered']
    #allocation4 [shape = 's32[1]{0}', space=sflag, size = 0x4, scoped, tag = 'scoped memory for tpu_custom_call.1']
    %11 = vsyncpa [#allocation4], 0
    // Predicated region
    $region2: #{tpu_custom_call.1} parent=1 // pred_check
      _
    $region3: #{tpu_custom_call.1} parent=1 // pred_check_branch
      %13 = sbr.rel (0) target = $region5
    $region4: #{tpu_custom_call.1} parent=1 // pred_region
      _
    $region5: #{tpu_custom_call.1} parent=1 // pred_fallthru
      _
    // Predicated region
    $region6: #{tpu_custom_call.1} parent=1 // pred_check
      _
    $region7: #{tpu_custom_call.1} parent=1 // pred_check_branch
      %15 = sbr.rel (0) target = $region9
    $region8: #{tpu_custom_call.1} parent=1 // pred_region
      _
    $region9: #{tpu_custom_call.1} parent=1 // pred_fallthru
      _
    // Predicated region
    $region10: #{tpu_custom_call.1} parent=1 // pred_check
      _
    $region11: #{tpu_custom_call.1} parent=1 // pred_check_branch
      %17 = sbr.rel (0) target = $region13
    $region12: #{tpu_custom_call.1} parent=1 // pred_region
      _
    $region13: #{tpu_custom_call.1} parent=1 // pred_fallthru
      _
    // Predicated region
    $region14: #{tpu_custom_call.1} parent=1 // pred_check
      _
    $region15: #{tpu_custom_call.1} parent=1 // pred_check_branch
      %19 = sbr.rel (0) target = $region17
    $region16: #{tpu_custom_call.1} parent=1 // pred_region
      _
    $region17: #{tpu_custom_call.1} parent=1 // pred_fallthru
      _
    // Predicated region
    $region18: #{tpu_custom_call.1} parent=1 // pred_check
      _
    $region19: #{tpu_custom_call.1} parent=1 // pred_check_branch
      %21 = sbr.rel (0) target = $region21
    $region20: #{tpu_custom_call.1} parent=1 // pred_region
      _
    $region21: #{tpu_custom_call.1} parent=1 // pred_fallthru
      _
    %v22 = vld [vmem:[%s1] sm:$0xff]
    %v23 = vld [vmem:[%s1 + $0x8] sm:$0xff]
    %v24 = vld [vmem:[%s1 + $0x10] sm:$0xff]
    %v25 = vld [vmem:[%s1 + $0x18] sm:$0xff]
    %v26 = vld [vmem:[%s1 + $0x20] sm:$0xff]
    %v27 = vld [vmem:[%s1 + $0x28] sm:$0xff]
    %v28 = vld [vmem:[%s1 + $0x30] sm:$0xff]
    %v29 = vld [vmem:[%s1 + $0x38] sm:$0xff]
    %v30 = vld [vmem:[%s1 + $0x40] sm:$0xff]
    %v31 = vld [vmem:[%s1 + $0x48] sm:$0xff]
    %v32 = vld [vmem:[%s1 + $0x50] sm:$0xff]
    %v33 = vld [vmem:[%s1 + $0x58] sm:$0xff]
    %v34 = vld [vmem:[%s1 + $0x60] sm:$0xff]
    %v35 = vld [vmem:[%s1 + $0x68] sm:$0xff]
    %v36 = vld [vmem:[%s1 + $0x70] sm:$0xff]
    %v37 = vld [vmem:[%s1 + $0x78] sm:$0xff]
    %v38 = vld [vmem:[%s1 + $0x80] sm:$0xff]
    %v39 = vld [vmem:[%s1 + $0x88] sm:$0xff]
    %v40 = vld [vmem:[%s1 + $0x90] sm:$0xff]
    %v41 = vld [vmem:[%s1 + $0x98] sm:$0xff]
    %v42 = vld [vmem:[%s1 + $0xa0] sm:$0xff]
    %v43 = vld [vmem:[%s1 + $0xa8] sm:$0xff]
    %v44 = vld [vmem:[%s1 + $0xb0] sm:$0xff]
    %v45 = vld [vmem:[%s1 + $0xb8] sm:$0xff]
    %v46 = vld [vmem:[%s1 + $0xc0] sm:$0xff]
    %v47 = vld [vmem:[%s1 + $0xc8] sm:$0xff]
    %v48 = vld [vmem:[%s1 + $0xd0] sm:$0xff]
    %v49 = vld [vmem:[%s1 + $0xd8] sm:$0xff]
    %v50 = vld [vmem:[%s1 + $0xe0] sm:$0xff]
    %v51 = vld [vmem:[%s1 + $0xe8] sm:$0xff]
    %v52 = vld [vmem:[%s1 + $0xf0] sm:$0xff]
    %v53 = vld [vmem:[%s1 + $0xf8] sm:$0xff]
    %v54 = vld [vmem:[%s1 + $0x100] sm:$0xff]
    %v55 = vld [vmem:[%s1 + $0x108] sm:$0xff]
    %v56 = vld [vmem:[%s1 + $0x110] sm:$0xff]
    %v57 = vld [vmem:[%s1 + $0x118] sm:$0xff]
    %v58 = vld [vmem:[%s1 + $0x120] sm:$0xff]
    %v59 = vld [vmem:[%s1 + $0x128] sm:$0xff]
    %v60 = vld [vmem:[%s1 + $0x130] sm:$0xff]
    %v61 = vld [vmem:[%s1 + $0x138] sm:$0xff]
    %v62 = vld [vmem:[%s1 + $0x140] sm:$0xff]
    %v63 = vld [vmem:[%s1 + $0x148] sm:$0xff]
    %v64 = vld [vmem:[%s1 + $0x150] sm:$0xff]
    %v65 = vld [vmem:[%s1 + $0x158] sm:$0xff]
    %v66 = vld [vmem:[%s1 + $0x160] sm:$0xff]
    %v67 = vld [vmem:[%s1 + $0x168] sm:$0xff]
    %v68 = vld [vmem:[%s1 + $0x170] sm:$0xff]
    %v69 = vld [vmem:[%s1 + $0x178] sm:$0xff]
    %v70 = vld [vmem:[%s1 + $0x180] sm:$0xff]
    %v71 = vld [vmem:[%s1 + $0x188] sm:$0xff]
    %v72 = vld [vmem:[%s1 + $0x190] sm:$0xff]
    %v73 = vld [vmem:[%s1 + $0x198] sm:$0xff]
    %v74 = vld [vmem:[%s1 + $0x1a0] sm:$0xff]
    %v75 = vld [vmem:[%s1 + $0x1a8] sm:$0xff]
    %v76 = vld [vmem:[%s1 + $0x1b0] sm:$0xff]
    %v77 = vld [vmem:[%s1 + $0x1b8] sm:$0xff]
    %v78 = vld [vmem:[%s1 + $0x1c0] sm:$0xff]
    %v79 = vld [vmem:[%s1 + $0x1c8] sm:$0xff]
    %v80 = vld [vmem:[%s1 + $0x1d0] sm:$0xff]
    %v81 = vld [vmem:[%s1 + $0x1d8] sm:$0xff]
    %v82 = vld [vmem:[%s1 + $0x1e0] sm:$0xff]
    %v83 = vld [vmem:[%s1 + $0x1e8] sm:$0xff]
    %v84 = vld [vmem:[%s1 + $0x1f0] sm:$0xff]
    %v85 = vld [vmem:[%s1 + $0x1f8] sm:$0xff]
    %v86 = vld [vmem:[%s0] sm:$0xff]
    %v87 = vld [vmem:[%s0 + $0x8] sm:$0xff]
    %v88 = vld [vmem:[%s0 + $0x10] sm:$0xff]
    %v89 = vld [vmem:[%s0 + $0x18] sm:$0xff]
    %v90 = vld [vmem:[%s0 + $0x20] sm:$0xff]
    %v91 = vld [vmem:[%s0 + $0x28] sm:$0xff]
    %v92 = vld [vmem:[%s0 + $0x30] sm:$0xff]
    %v93 = vld [vmem:[%s0 + $0x38] sm:$0xff]
    %v94 = vld [vmem:[%s0 + $0x40] sm:$0xff]
    %v95 = vld [vmem:[%s0 + $0x48] sm:$0xff]
    %v96 = vld [vmem:[%s0 + $0x50] sm:$0xff]
    %v97 = vld [vmem:[%s0 + $0x58] sm:$0xff]
    %v98 = vld [vmem:[%s0 + $0x60] sm:$0xff]
    %v99 = vld [vmem:[%s0 + $0x68] sm:$0xff]
    %v100 = vld [vmem:[%s0 + $0x70] sm:$0xff]
    %v101 = vld [vmem:[%s0 + $0x78] sm:$0xff]
    %v102 = vld [vmem:[%s2] sm:$0xff]
    %v103 = vld [vmem:[%s2 + $0x8] sm:$0xff]
    %v104 = vld [vmem:[%s2 + $0x10] sm:$0xff]
    %v105 = vld [vmem:[%s2 + $0x18] sm:$0xff]
    %v106 = vld [vmem:[%s2 + $0x20] sm:$0xff]
    %v107 = vld [vmem:[%s2 + $0x28] sm:$0xff]
    %v108 = vld [vmem:[%s2 + $0x30] sm:$0xff]
    %v109 = vld [vmem:[%s2 + $0x38] sm:$0xff]
    %v110 = vld [vmem:[%s2 + $0x40] sm:$0xff]
    %v111 = vld [vmem:[%s2 + $0x48] sm:$0xff]
    %v112 = vld [vmem:[%s2 + $0x50] sm:$0xff]
    %v113 = vld [vmem:[%s2 + $0x58] sm:$0xff]
    %v114 = vld [vmem:[%s2 + $0x60] sm:$0xff]
    %v115 = vld [vmem:[%s2 + $0x68] sm:$0xff]
    %v116 = vld [vmem:[%s2 + $0x70] sm:$0xff]
    %v117 = vld [vmem:[%s2 + $0x78] sm:$0xff]
    %v118 = vld [vmem:[%s2 + $0x80] sm:$0xff]
    %v119 = vld [vmem:[%s2 + $0x88] sm:$0xff]
    %v120 = vld [vmem:[%s2 + $0x90] sm:$0xff]
    %v121 = vld [vmem:[%s2 + $0x98] sm:$0xff]
    %v122 = vld [vmem:[%s2 + $0xa0] sm:$0xff]
    %v123 = vld [vmem:[%s2 + $0xa8] sm:$0xff]
    %v124 = vld [vmem:[%s2 + $0xb0] sm:$0xff]
    %v125 = vld [vmem:[%s2 + $0xb8] sm:$0xff]
    %v126 = vld [vmem:[%s2 + $0xc0] sm:$0xff]
    %v127 = vld [vmem:[%s2 + $0xc8] sm:$0xff]
    %v128 = vld [vmem:[%s2 + $0xd0] sm:$0xff]
    %v129 = vld [vmem:[%s2 + $0xd8] sm:$0xff]
    %v130 = vld [vmem:[%s2 + $0xe0] sm:$0xff]
    %v131 = vld [vmem:[%s2 + $0xe8] sm:$0xff]
    %v132 = vld [vmem:[%s2 + $0xf0] sm:$0xff]
    %v133 = vld [vmem:[%s2 + $0xf8] sm:$0xff]
    %v134 = vld [vmem:[%s2 + $0x100] sm:$0xff]
    %v135 = vld [vmem:[%s2 + $0x108] sm:$0xff]
    %v136 = vld [vmem:[%s2 + $0x110] sm:$0xff]
    %v137 = vld [vmem:[%s2 + $0x118] sm:$0xff]
    %v138 = vld [vmem:[%s2 + $0x120] sm:$0xff]
    %v139 = vld [vmem:[%s2 + $0x128] sm:$0xff]
    %v140 = vld [vmem:[%s2 + $0x130] sm:$0xff]
    %v141 = vld [vmem:[%s2 + $0x138] sm:$0xff]
    %v142 = vld [vmem:[%s2 + $0x140] sm:$0xff]
    %v143 = vld [vmem:[%s2 + $0x148] sm:$0xff]
    %v144 = vld [vmem:[%s2 + $0x150] sm:$0xff]
    %v145 = vld [vmem:[%s2 + $0x158] sm:$0xff]
    %v146 = vld [vmem:[%s2 + $0x160] sm:$0xff]
    %v147 = vld [vmem:[%s2 + $0x168] sm:$0xff]
    %v148 = vld [vmem:[%s2 + $0x170] sm:$0xff]
    %v149 = vld [vmem:[%s2 + $0x178] sm:$0xff]
    %v150 = vld [vmem:[%s2 + $0x180] sm:$0xff]
    %v151 = vld [vmem:[%s2 + $0x188] sm:$0xff]
    %v152 = vld [vmem:[%s2 + $0x190] sm:$0xff]
    %v153 = vld [vmem:[%s2 + $0x198] sm:$0xff]
    %v154 = vld [vmem:[%s2 + $0x1a0] sm:$0xff]
    %v155 = vld [vmem:[%s2 + $0x1a8] sm:$0xff]
    %v156 = vld [vmem:[%s2 + $0x1b0] sm:$0xff]
    %v157 = vld [vmem:[%s2 + $0x1b8] sm:$0xff]
    %v158 = vld [vmem:[%s2 + $0x1c0] sm:$0xff]
    %v159 = vld [vmem:[%s2 + $0x1c8] sm:$0xff]
    %v160 = vld [vmem:[%s2 + $0x1d0] sm:$0xff]
    %v161 = vld [vmem:[%s2 + $0x1d8] sm:$0xff]
    %v162 = vld [vmem:[%s2 + $0x1e0] sm:$0xff]
    %v163 = vld [vmem:[%s2 + $0x1e8] sm:$0xff]
    %v164 = vld [vmem:[%s2 + $0x1f0] sm:$0xff]
    %v165 = vld [vmem:[%s2 + $0x1f8] sm:$0xff]
    %167 = vset.pattern.permute.xlu0 0
    %168 = vperm.xlu0 %167, %v102
    %v169 = vpop.permute.xlu0 %168
    %172 = vset.pattern.permute.xlu0 0
    %173 = vperm.xlu0 %172, %v103
    %v174 = vpop.permute.xlu0 %173
    %177 = vset.pattern.permute.xlu0 0
    %178 = vperm.xlu0 %177, %v104
    %v179 = vpop.permute.xlu0 %178
    %182 = vset.pattern.permute.xlu0 0
    %183 = vperm.xlu0 %182, %v105
    %v184 = vpop.permute.xlu0 %183
    %187 = vset.pattern.permute.xlu0 0
    %188 = vperm.xlu0 %187, %v106
    %v189 = vpop.permute.xlu0 %188
    %192 = vset.pattern.permute.xlu0 0
    %193 = vperm.xlu0 %192, %v107
    %v194 = vpop.permute.xlu0 %193
    %197 = vset.pattern.permute.xlu0 0
    %198 = vperm.xlu0 %197, %v108
    %v199 = vpop.permute.xlu0 %198
    %202 = vset.pattern.permute.xlu0 0
    %203 = vperm.xlu0 %202, %v109
    %v204 = vpop.permute.xlu0 %203
    %207 = vset.pattern.permute.xlu0 0
    %208 = vperm.xlu0 %207, %v110
    %v209 = vpop.permute.xlu0 %208
    %212 = vset.pattern.permute.xlu0 0
    %213 = vperm.xlu0 %212, %v111
    %v214 = vpop.permute.xlu0 %213
    %217 = vset.pattern.permute.xlu0 0
    %218 = vperm.xlu0 %217, %v112
    %v219 = vpop.permute.xlu0 %218
    %222 = vset.pattern.permute.xlu0 0
    %223 = vperm.xlu0 %222, %v113
    %v224 = vpop.permute.xlu0 %223
    %227 = vset.pattern.permute.xlu0 0
    %228 = vperm.xlu0 %227, %v114
    %v229 = vpop.permute.xlu0 %228
    %232 = vset.pattern.permute.xlu0 0
    %233 = vperm.xlu0 %232, %v115
    %v234 = vpop.permute.xlu0 %233
    %237 = vset.pattern.permute.xlu0 0
    %238 = vperm.xlu0 %237, %v116
    %v239 = vpop.permute.xlu0 %238
    %242 = vset.pattern.permute.xlu0 0
    %243 = vperm.xlu0 %242, %v117
    %v244 = vpop.permute.xlu0 %243
    %247 = vset.pattern.permute.xlu0 0
    %248 = vperm.xlu0 %247, %v118
    %v249 = vpop.permute.xlu0 %248
    %252 = vset.pattern.permute.xlu0 0
    %253 = vperm.xlu0 %252, %v119
    %v254 = vpop.permute.xlu0 %253
    %257 = vset.pattern.permute.xlu0 0
    %258 = vperm.xlu0 %257, %v120
    %v259 = vpop.permute.xlu0 %258
    %262 = vset.pattern.permute.xlu0 0
    %263 = vperm.xlu0 %262, %v121
    %v264 = vpop.permute.xlu0 %263
    %267 = vset.pattern.permute.xlu0 0
    %268 = vperm.xlu0 %267, %v122
    %v269 = vpop.permute.xlu0 %268
    %272 = vset.pattern.permute.xlu0 0
    %273 = vperm.xlu0 %272, %v123
    %v274 = vpop.permute.xlu0 %273
    %277 = vset.pattern.permute.xlu0 0
    %278 = vperm.xlu0 %277, %v124
    %v279 = vpop.permute.xlu0 %278
    %282 = vset.pattern.permute.xlu0 0
    %283 = vperm.xlu0 %282, %v125
    %v284 = vpop.permute.xlu0 %283
    %287 = vset.pattern.permute.xlu0 0
    %288 = vperm.xlu0 %287, %v126
    %v289 = vpop.permute.xlu0 %288
    %292 = vset.pattern.permute.xlu0 0
    %293 = vperm.xlu0 %292, %v127
    %v294 = vpop.permute.xlu0 %293
    %297 = vset.pattern.permute.xlu0 0
    %298 = vperm.xlu0 %297, %v128
    %v299 = vpop.permute.xlu0 %298
    %302 = vset.pattern.permute.xlu0 0
    %303 = vperm.xlu0 %302, %v129
    %v304 = vpop.permute.xlu0 %303
    %307 = vset.pattern.permute.xlu0 0
    %308 = vperm.xlu0 %307, %v130
    %v309 = vpop.permute.xlu0 %308
    %312 = vset.pattern.permute.xlu0 0
    %313 = vperm.xlu0 %312, %v131
    %v314 = vpop.permute.xlu0 %313
    %317 = vset.pattern.permute.xlu0 0
    %318 = vperm.xlu0 %317, %v132
    %v319 = vpop.permute.xlu0 %318
    %322 = vset.pattern.permute.xlu0 0
    %323 = vperm.xlu0 %322, %v133
    %v324 = vpop.permute.xlu0 %323
    %327 = vset.pattern.permute.xlu0 0
    %328 = vperm.xlu0 %327, %v134
    %v329 = vpop.permute.xlu0 %328
    %332 = vset.pattern.permute.xlu0 0
    %333 = vperm.xlu0 %332, %v135
    %v334 = vpop.permute.xlu0 %333
    %337 = vset.pattern.permute.xlu0 0
    %338 = vperm.xlu0 %337, %v136
    %v339 = vpop.permute.xlu0 %338
    %342 = vset.pattern.permute.xlu0 0
    %343 = vperm.xlu0 %342, %v137
    %v344 = vpop.permute.xlu0 %343
    %347 = vset.pattern.permute.xlu0 0
    %348 = vperm.xlu0 %347, %v138
    %v349 = vpop.permute.xlu0 %348
    %352 = vset.pattern.permute.xlu0 0
    %353 = vperm.xlu0 %352, %v139
    %v354 = vpop.permute.xlu0 %353
    %357 = vset.pattern.permute.xlu0 0
    %358 = vperm.xlu0 %357, %v140
    %v359 = vpop.permute.xlu0 %358
    %362 = vset.pattern.permute.xlu0 0
    %363 = vperm.xlu0 %362, %v141
    %v364 = vpop.permute.xlu0 %363
    %367 = vset.pattern.permute.xlu0 0
    %368 = vperm.xlu0 %367, %v142
    %v369 = vpop.permute.xlu0 %368
    %372 = vset.pattern.permute.xlu0 0
    %373 = vperm.xlu0 %372, %v143
    %v374 = vpop.permute.xlu0 %373
    %377 = vset.pattern.permute.xlu0 0
    %378 = vperm.xlu0 %377, %v144
    %v379 = vpop.permute.xlu0 %378
    %382 = vset.pattern.permute.xlu0 0
    %383 = vperm.xlu0 %382, %v145
    %v384 = vpop.permute.xlu0 %383
    %387 = vset.pattern.permute.xlu0 0
    %388 = vperm.xlu0 %387, %v146
    %v389 = vpop.permute.xlu0 %388
    %392 = vset.pattern.permute.xlu0 0
    %393 = vperm.xlu0 %392, %v147
    %v394 = vpop.permute.xlu0 %393
    %397 = vset.pattern.permute.xlu0 0
    %398 = vperm.xlu0 %397, %v148
    %v399 = vpop.permute.xlu0 %398
    %402 = vset.pattern.permute.xlu0 0
    %403 = vperm.xlu0 %402, %v149
    %v404 = vpop.permute.xlu0 %403
    %407 = vset.pattern.permute.xlu0 0
    %408 = vperm.xlu0 %407, %v150
    %v409 = vpop.permute.xlu0 %408
    %412 = vset.pattern.permute.xlu0 0
    %413 = vperm.xlu0 %412, %v151
    %v414 = vpop.permute.xlu0 %413
    %417 = vset.pattern.permute.xlu0 0
    %418 = vperm.xlu0 %417, %v152
    %v419 = vpop.permute.xlu0 %418
    %422 = vset.pattern.permute.xlu0 0
    %423 = vperm.xlu0 %422, %v153
    %v424 = vpop.permute.xlu0 %423
    %427 = vset.pattern.permute.xlu0 0
    %428 = vperm.xlu0 %427, %v154
    %v429 = vpop.permute.xlu0 %428
    %432 = vset.pattern.permute.xlu0 0
    %433 = vperm.xlu0 %432, %v155
    %v434 = vpop.permute.xlu0 %433
    %437 = vset.pattern.permute.xlu0 0
    %438 = vperm.xlu0 %437, %v156
    %v439 = vpop.permute.xlu0 %438
    %442 = vset.pattern.permute.xlu0 0
    %443 = vperm.xlu0 %442, %v157
    %v444 = vpop.permute.xlu0 %443
    %447 = vset.pattern.permute.xlu0 0
    %448 = vperm.xlu0 %447, %v158
    %v449 = vpop.permute.xlu0 %448
    %452 = vset.pattern.permute.xlu0 0
    %453 = vperm.xlu0 %452, %v159
    %v454 = vpop.permute.xlu0 %453
    %457 = vset.pattern.permute.xlu0 0
    %458 = vperm.xlu0 %457, %v160
    %v459 = vpop.permute.xlu0 %458
    %462 = vset.pattern.permute.xlu0 0
    %463 = vperm.xlu0 %462, %v161
    %v464 = vpop.permute.xlu0 %463
    %467 = vset.pattern.permute.xlu0 0
    %468 = vperm.xlu0 %467, %v162
    %v469 = vpop.permute.xlu0 %468
    %472 = vset.pattern.permute.xlu0 0
    %473 = vperm.xlu0 %472, %v163
    %v474 = vpop.permute.xlu0 %473
    %477 = vset.pattern.permute.xlu0 0
    %478 = vperm.xlu0 %477, %v164
    %v479 = vpop.permute.xlu0 %478
    %482 = vset.pattern.permute.xlu0 0
    %483 = vperm.xlu0 %482, %v165
    %v484 = vpop.permute.xlu0 %483
    %v550 = vunpack.c.l.b16 %v22
    %v551 = vunpack.c.h.b16 %v22
    %v552 = vunpack.c.l.b16 %v23
    %v553 = vunpack.c.h.b16 %v23
    %v554 = vunpack.c.l.b16 %v24
    %v555 = vunpack.c.h.b16 %v24
    %v556 = vunpack.c.l.b16 %v25
    %v557 = vunpack.c.h.b16 %v25
    %v558 = vunpack.c.l.b16 %v26
    %v559 = vunpack.c.h.b16 %v26
    %v560 = vunpack.c.l.b16 %v27
    %v561 = vunpack.c.h.b16 %v27
    %v562 = vunpack.c.l.b16 %v28
    %v563 = vunpack.c.h.b16 %v28
    %v564 = vunpack.c.l.b16 %v29
    %v565 = vunpack.c.h.b16 %v29
    %v566 = vunpack.c.l.b16 %v30
    %v567 = vunpack.c.h.b16 %v30
    %v568 = vunpack.c.l.b16 %v31
    %v569 = vunpack.c.h.b16 %v31
    %v570 = vunpack.c.l.b16 %v32
    %v571 = vunpack.c.h.b16 %v32
    %v572 = vunpack.c.l.b16 %v33
    %v573 = vunpack.c.h.b16 %v33
    %v574 = vunpack.c.l.b16 %v34
    %v575 = vunpack.c.h.b16 %v34
    %v576 = vunpack.c.l.b16 %v35
    %v577 = vunpack.c.h.b16 %v35
    %v578 = vunpack.c.l.b16 %v36
    %v579 = vunpack.c.h.b16 %v36
    %v580 = vunpack.c.l.b16 %v37
    %v581 = vunpack.c.h.b16 %v37
    %v582 = vunpack.c.l.b16 %v38
    %v583 = vunpack.c.h.b16 %v38
    %v584 = vunpack.c.l.b16 %v39
    %v585 = vunpack.c.h.b16 %v39
    %v586 = vunpack.c.l.b16 %v40
    %v587 = vunpack.c.h.b16 %v40
    %v588 = vunpack.c.l.b16 %v41
    %v589 = vunpack.c.h.b16 %v41
    %v590 = vunpack.c.l.b16 %v42
    %v591 = vunpack.c.h.b16 %v42
    %v592 = vunpack.c.l.b16 %v43
    %v593 = vunpack.c.h.b16 %v43
    %v594 = vunpack.c.l.b16 %v44
    %v595 = vunpack.c.h.b16 %v44
    %v596 = vunpack.c.l.b16 %v45
    %v597 = vunpack.c.h.b16 %v45
    %v598 = vunpack.c.l.b16 %v46
    %v599 = vunpack.c.h.b16 %v46
    %v600 = vunpack.c.l.b16 %v47
    %v601 = vunpack.c.h.b16 %v47
    %v602 = vunpack.c.l.b16 %v48
    %v603 = vunpack.c.h.b16 %v48
    %v604 = vunpack.c.l.b16 %v49
    %v605 = vunpack.c.h.b16 %v49
    %v606 = vunpack.c.l.b16 %v50
    %v607 = vunpack.c.h.b16 %v50
    %v608 = vunpack.c.l.b16 %v51
    %v609 = vunpack.c.h.b16 %v51
    %v610 = vunpack.c.l.b16 %v52
    %v611 = vunpack.c.h.b16 %v52
    %v612 = vunpack.c.l.b16 %v53
    %v613 = vunpack.c.h.b16 %v53
    %v614 = vunpack.c.l.b16 %v54
    %v615 = vunpack.c.h.b16 %v54
    %v616 = vunpack.c.l.b16 %v55
    %v617 = vunpack.c.h.b16 %v55
    %v618 = vunpack.c.l.b16 %v56
    %v619 = vunpack.c.h.b16 %v56
    %v620 = vunpack.c.l.b16 %v57
    %v621 = vunpack.c.h.b16 %v57
    %v622 = vunpack.c.l.b16 %v58
    %v623 = vunpack.c.h.b16 %v58
    %v624 = vunpack.c.l.b16 %v59
    %v625 = vunpack.c.h.b16 %v59
    %v626 = vunpack.c.l.b16 %v60
    %v627 = vunpack.c.h.b16 %v60
    %v628 = vunpack.c.l.b16 %v61
    %v629 = vunpack.c.h.b16 %v61
    %v630 = vunpack.c.l.b16 %v62
    %v631 = vunpack.c.h.b16 %v62
    %v632 = vunpack.c.l.b16 %v63
    %v633 = vunpack.c.h.b16 %v63
    %v634 = vunpack.c.l.b16 %v64
    %v635 = vunpack.c.h.b16 %v64
    %v636 = vunpack.c.l.b16 %v65
    %v637 = vunpack.c.h.b16 %v65
    %v638 = vunpack.c.l.b16 %v66
    %v639 = vunpack.c.h.b16 %v66
    %v640 = vunpack.c.l.b16 %v67
    %v641 = vunpack.c.h.b16 %v67
    %v642 = vunpack.c.l.b16 %v68
    %v643 = vunpack.c.h.b16 %v68
    %v644 = vunpack.c.l.b16 %v69
    %v645 = vunpack.c.h.b16 %v69
    %v646 = vunpack.c.l.b16 %v70
    %v647 = vunpack.c.h.b16 %v70
    %v648 = vunpack.c.l.b16 %v71
    %v649 = vunpack.c.h.b16 %v71
    %v650 = vunpack.c.l.b16 %v72
    %v651 = vunpack.c.h.b16 %v72
    %v652 = vunpack.c.l.b16 %v73
    %v653 = vunpack.c.h.b16 %v73
    %v654 = vunpack.c.l.b16 %v74
    %v655 = vunpack.c.h.b16 %v74
    %v656 = vunpack.c.l.b16 %v75
    %v657 = vunpack.c.h.b16 %v75
    %v658 = vunpack.c.l.b16 %v76
    %v659 = vunpack.c.h.b16 %v76
    %v660 = vunpack.c.l.b16 %v77
    %v661 = vunpack.c.h.b16 %v77
    %v662 = vunpack.c.l.b16 %v78
    %v663 = vunpack.c.h.b16 %v78
    %v664 = vunpack.c.l.b16 %v79
    %v665 = vunpack.c.h.b16 %v79
    %v666 = vunpack.c.l.b16 %v80
    %v667 = vunpack.c.h.b16 %v80
    %v668 = vunpack.c.l.b16 %v81
    %v669 = vunpack.c.h.b16 %v81
    %v670 = vunpack.c.l.b16 %v82
    %v671 = vunpack.c.h.b16 %v82
    %v672 = vunpack.c.l.b16 %v83
    %v673 = vunpack.c.h.b16 %v83
    %v674 = vunpack.c.l.b16 %v84
    %v675 = vunpack.c.h.b16 %v84
    %v676 = vunpack.c.l.b16 %v85
    %v677 = vunpack.c.h.b16 %v85
    %v678 = vpack.c.b16 %v552, %v550
    %v679 = vpack.c.b16 %v553, %v551
    %v680 = vpack.c.b16 %v556, %v554
    %v681 = vpack.c.b16 %v557, %v555
    %v682 = vpack.c.b16 %v560, %v558
    %v683 = vpack.c.b16 %v561, %v559
    %v684 = vpack.c.b16 %v564, %v562
    %v685 = vpack.c.b16 %v565, %v563
    %v686 = vpack.c.b16 %v568, %v566
    %v687 = vpack.c.b16 %v569, %v567
    %v688 = vpack.c.b16 %v572, %v570
    %v689 = vpack.c.b16 %v573, %v571
    %v690 = vpack.c.b16 %v576, %v574
    %v691 = vpack.c.b16 %v577, %v575
    %v692 = vpack.c.b16 %v580, %v578
    %v693 = vpack.c.b16 %v581, %v579
    %v694 = vpack.c.b16 %v584, %v582
    %v695 = vpack.c.b16 %v585, %v583
    %v696 = vpack.c.b16 %v588, %v586
    %v697 = vpack.c.b16 %v589, %v587
    %v698 = vpack.c.b16 %v592, %v590
    %v699 = vpack.c.b16 %v593, %v591
    %v700 = vpack.c.b16 %v596, %v594
    %v701 = vpack.c.b16 %v597, %v595
    %v702 = vpack.c.b16 %v600, %v598
    %v703 = vpack.c.b16 %v601, %v599
    %v704 = vpack.c.b16 %v604, %v602
    %v705 = vpack.c.b16 %v605, %v603
    %v706 = vpack.c.b16 %v608, %v606
    %v707 = vpack.c.b16 %v609, %v607
    %v708 = vpack.c.b16 %v612, %v610
    %v709 = vpack.c.b16 %v613, %v611
    %v710 = vpack.c.b16 %v616, %v614
    %v711 = vpack.c.b16 %v617, %v615
    %v712 = vpack.c.b16 %v620, %v618
    %v713 = vpack.c.b16 %v621, %v619
    %v714 = vpack.c.b16 %v624, %v622
    %v715 = vpack.c.b16 %v625, %v623
    %v716 = vpack.c.b16 %v628, %v626
    %v717 = vpack.c.b16 %v629, %v627
    %v718 = vpack.c.b16 %v632, %v630
    %v719 = vpack.c.b16 %v633, %v631
    %v720 = vpack.c.b16 %v636, %v634
    %v721 = vpack.c.b16 %v637, %v635
    %v722 = vpack.c.b16 %v640, %v638
    %v723 = vpack.c.b16 %v641, %v639
    %v724 = vpack.c.b16 %v644, %v642
    %v725 = vpack.c.b16 %v645, %v643
    %v726 = vpack.c.b16 %v648, %v646
    %v727 = vpack.c.b16 %v649, %v647
    %v728 = vpack.c.b16 %v652, %v650
    %v729 = vpack.c.b16 %v653, %v651
    %v730 = vpack.c.b16 %v656, %v654
    %v731 = vpack.c.b16 %v657, %v655
    %v732 = vpack.c.b16 %v660, %v658
    %v733 = vpack.c.b16 %v661, %v659
    %v734 = vpack.c.b16 %v664, %v662
    %v735 = vpack.c.b16 %v665, %v663
    %v736 = vpack.c.b16 %v668, %v666
    %v737 = vpack.c.b16 %v669, %v667
    %v738 = vpack.c.b16 %v672, %v670
    %v739 = vpack.c.b16 %v673, %v671
    %v740 = vpack.c.b16 %v676, %v674
    %v741 = vpack.c.b16 %v677, %v675
    %v822 = vunpack.c.l.b16 %v86
    %v823 = vunpack.c.h.b16 %v86
    %v824 = vunpack.c.l.b16 %v87
    %v825 = vunpack.c.h.b16 %v87
    %v826 = vunpack.c.l.b16 %v88
    %v827 = vunpack.c.h.b16 %v88
    %v828 = vunpack.c.l.b16 %v89
    %v829 = vunpack.c.h.b16 %v89
    %v830 = vunpack.c.l.b16 %v90
    %v831 = vunpack.c.h.b16 %v90
    %v832 = vunpack.c.l.b16 %v91
    %v833 = vunpack.c.h.b16 %v91
    %v834 = vunpack.c.l.b16 %v92
    %v835 = vunpack.c.h.b16 %v92
    %v836 = vunpack.c.l.b16 %v93
    %v837 = vunpack.c.h.b16 %v93
    %v838 = vunpack.c.l.b16 %v94
    %v839 = vunpack.c.h.b16 %v94
    %v840 = vunpack.c.l.b16 %v95
    %v841 = vunpack.c.h.b16 %v95
    %v842 = vunpack.c.l.b16 %v96
    %v843 = vunpack.c.h.b16 %v96
    %v844 = vunpack.c.l.b16 %v97
    %v845 = vunpack.c.h.b16 %v97
    %v846 = vunpack.c.l.b16 %v98
    %v847 = vunpack.c.h.b16 %v98
    %v848 = vunpack.c.l.b16 %v99
    %v849 = vunpack.c.h.b16 %v99
    %v850 = vunpack.c.l.b16 %v100
    %v851 = vunpack.c.h.b16 %v100
    %v852 = vunpack.c.l.b16 %v101
    %v853 = vunpack.c.h.b16 %v101
    %v854 = vpack.c.b16 %v824, %v822
    %v855 = vpack.c.b16 %v825, %v823
    %v856 = vpack.c.b16 %v828, %v826
    %v857 = vpack.c.b16 %v829, %v827
    %v858 = vpack.c.b16 %v832, %v830
    %v859 = vpack.c.b16 %v833, %v831
    %v860 = vpack.c.b16 %v836, %v834
    %v861 = vpack.c.b16 %v837, %v835
    %v862 = vpack.c.b16 %v840, %v838
    %v863 = vpack.c.b16 %v841, %v839
    %v864 = vpack.c.b16 %v844, %v842
    %v865 = vpack.c.b16 %v845, %v843
    %v866 = vpack.c.b16 %v848, %v846
    %v867 = vpack.c.b16 %v849, %v847
    %v868 = vpack.c.b16 %v852, %v850
    %v869 = vpack.c.b16 %v853, %v851
    %886 = vmatpush.bf16.xpose.msra.mxu0 %v868
    %887 = vmatpush.bf16.xpose.msra.mxu0 %v866
    %888 = vmatpush.bf16.xpose.msra.mxu0 %v864
    %889 = vmatpush.bf16.xpose.msra.mxu0 %v862
    %890 = vmatpush.bf16.xpose.msra.mxu0 %v860
    %891 = vmatpush.bf16.xpose.msra.mxu0 %v858
    %892 = vmatpush.bf16.xpose.msra.mxu0 %v856
    %893 = vmatpush.bf16.xpose.msra.mxu0 %v854
    %894 = vmatmul.bf16.gmra.mxu0 %v678
    %v895 = vpop.f32.mrf.mxu0
    %v896 = vadd.f32 %v169, %v895
    %v897 = vpop.f32.mrf.mxu0
    %v898 = vadd.f32 %v174, %v897
    %899 = vmatmul.bf16.gmra.mxu0 %v680
    %v900 = vpop.f32.mrf.mxu0
    %v901 = vadd.f32 %v179, %v900
    %v902 = vpop.f32.mrf.mxu0
    %v903 = vadd.f32 %v184, %v902
    %904 = vmatmul.bf16.gmra.mxu0 %v682
    %v905 = vpop.f32.mrf.mxu0
    %v906 = vadd.f32 %v189, %v905
    %v907 = vpop.f32.mrf.mxu0
    %v908 = vadd.f32 %v194, %v907
    %909 = vmatmul.bf16.gmra.mxu0 %v684
    %v910 = vpop.f32.mrf.mxu0
    %v911 = vadd.f32 %v199, %v910
    %v912 = vpop.f32.mrf.mxu0
    %v913 = vadd.f32 %v204, %v912
    %914 = vmatmul.bf16.gmra.mxu0 %v686
    %v915 = vpop.f32.mrf.mxu0
    %v916 = vadd.f32 %v209, %v915
    %v917 = vpop.f32.mrf.mxu0
    %v918 = vadd.f32 %v214, %v917
    %919 = vmatmul.bf16.gmra.mxu0 %v688
    %v920 = vpop.f32.mrf.mxu0
    %v921 = vadd.f32 %v219, %v920
    %v922 = vpop.f32.mrf.mxu0
    %v923 = vadd.f32 %v224, %v922
    %924 = vmatmul.bf16.gmra.mxu0 %v690
    %v925 = vpop.f32.mrf.mxu0
    %v926 = vadd.f32 %v229, %v925
    %v927 = vpop.f32.mrf.mxu0
    %v928 = vadd.f32 %v234, %v927
    %929 = vmatmul.bf16.gmra.mxu0 %v692
    %v930 = vpop.f32.mrf.mxu0
    %v931 = vadd.f32 %v239, %v930
    %v932 = vpop.f32.mrf.mxu0
    %v933 = vadd.f32 %v244, %v932
    %934 = vmatmul.bf16.gmra.mxu0 %v694
    %v935 = vpop.f32.mrf.mxu0
    %v936 = vadd.f32 %v249, %v935
    %v937 = vpop.f32.mrf.mxu0
    %v938 = vadd.f32 %v254, %v937
    %939 = vmatmul.bf16.gmra.mxu0 %v696
    %v940 = vpop.f32.mrf.mxu0
    %v941 = vadd.f32 %v259, %v940
    %v942 = vpop.f32.mrf.mxu0
    %v943 = vadd.f32 %v264, %v942
    %944 = vmatmul.bf16.gmra.mxu0 %v698
    %v945 = vpop.f32.mrf.mxu0
    %v946 = vadd.f32 %v269, %v945
    %v947 = vpop.f32.mrf.mxu0
    %v948 = vadd.f32 %v274, %v947
    %949 = vmatmul.bf16.gmra.mxu0 %v700
    %v950 = vpop.f32.mrf.mxu0
    %v951 = vadd.f32 %v279, %v950
    %v952 = vpop.f32.mrf.mxu0
    %v953 = vadd.f32 %v284, %v952
    %954 = vmatmul.bf16.gmra.mxu0 %v702
    %v955 = vpop.f32.mrf.mxu0
    %v956 = vadd.f32 %v289, %v955
    %v957 = vpop.f32.mrf.mxu0
    %v958 = vadd.f32 %v294, %v957
    %959 = vmatmul.bf16.gmra.mxu0 %v704
    %v960 = vpop.f32.mrf.mxu0
    %v961 = vadd.f32 %v299, %v960
    %v962 = vpop.f32.mrf.mxu0
    %v963 = vadd.f32 %v304, %v962
    %964 = vmatmul.bf16.gmra.mxu0 %v706
    %v965 = vpop.f32.mrf.mxu0
    %v966 = vadd.f32 %v309, %v965
    %v967 = vpop.f32.mrf.mxu0
    %v968 = vadd.f32 %v314, %v967
    %969 = vmatmul.bf16.gmra.mxu0 %v708
    %v970 = vpop.f32.mrf.mxu0
    %v971 = vadd.f32 %v319, %v970
    %v972 = vpop.f32.mrf.mxu0
    %v973 = vadd.f32 %v324, %v972
    %974 = vmatmul.bf16.gmra.mxu0 %v710
    %v975 = vpop.f32.mrf.mxu0
    %v976 = vadd.f32 %v329, %v975
    %v977 = vpop.f32.mrf.mxu0
    %v978 = vadd.f32 %v334, %v977
    %979 = vmatmul.bf16.gmra.mxu0 %v712
    %v980 = vpop.f32.mrf.mxu0
    %v981 = vadd.f32 %v339, %v980
    %v982 = vpop.f32.mrf.mxu0
    %v983 = vadd.f32 %v344, %v982
    %984 = vmatmul.bf16.gmra.mxu0 %v714
    %v985 = vpop.f32.mrf.mxu0
    %v986 = vadd.f32 %v349, %v985
    %v987 = vpop.f32.mrf.mxu0
    %v988 = vadd.f32 %v354, %v987
    %989 = vmatmul.bf16.gmra.mxu0 %v716
    %v990 = vpop.f32.mrf.mxu0
    %v991 = vadd.f32 %v359, %v990
    %v992 = vpop.f32.mrf.mxu0
    %v993 = vadd.f32 %v364, %v992
    %994 = vmatmul.bf16.gmra.mxu0 %v718
    %v995 = vpop.f32.mrf.mxu0
    %v996 = vadd.f32 %v369, %v995
    %v997 = vpop.f32.mrf.mxu0
    %v998 = vadd.f32 %v374, %v997
    %999 = vmatmul.bf16.gmra.mxu0 %v720
    %v1000 = vpop.f32.mrf.mxu0
    %v1001 = vadd.f32 %v379, %v1000
    %v1002 = vpop.f32.mrf.mxu0
    %v1003 = vadd.f32 %v384, %v1002
    %1004 = vmatmul.bf16.gmra.mxu0 %v722
    %v1005 = vpop.f32.mrf.mxu0
    %v1006 = vadd.f32 %v389, %v1005
    %v1007 = vpop.f32.mrf.mxu0
    %v1008 = vadd.f32 %v394, %v1007
    %1009 = vmatmul.bf16.gmra.mxu0 %v724
    %v1010 = vpop.f32.mrf.mxu0
    %v1011 = vadd.f32 %v399, %v1010
    %v1012 = vpop.f32.mrf.mxu0
    %v1013 = vadd.f32 %v404, %v1012
    %1014 = vmatmul.bf16.gmra.mxu0 %v726
    %v1015 = vpop.f32.mrf.mxu0
    %v1016 = vadd.f32 %v409, %v1015
    %v1017 = vpop.f32.mrf.mxu0
    %v1018 = vadd.f32 %v414, %v1017
    %1019 = vmatmul.bf16.gmra.mxu0 %v728
    %v1020 = vpop.f32.mrf.mxu0
    %v1021 = vadd.f32 %v419, %v1020
    %v1022 = vpop.f32.mrf.mxu0
    %v1023 = vadd.f32 %v424, %v1022
    %1024 = vmatmul.bf16.gmra.mxu0 %v730
    %v1025 = vpop.f32.mrf.mxu0
    %v1026 = vadd.f32 %v429, %v1025
    %v1027 = vpop.f32.mrf.mxu0
    %v1028 = vadd.f32 %v434, %v1027
    %1029 = vmatmul.bf16.gmra.mxu0 %v732
    %v1030 = vpop.f32.mrf.mxu0
    %v1031 = vadd.f32 %v439, %v1030
    %v1032 = vpop.f32.mrf.mxu0
    %v1033 = vadd.f32 %v444, %v1032
    %1034 = vmatmul.bf16.gmra.mxu0 %v734
    %v1035 = vpop.f32.mrf.mxu0
    %v1036 = vadd.f32 %v449, %v1035
    %v1037 = vpop.f32.mrf.mxu0
    %v1038 = vadd.f32 %v454, %v1037
    %1039 = vmatmul.bf16.gmra.mxu0 %v736
    %v1040 = vpop.f32.mrf.mxu0
    %v1041 = vadd.f32 %v459, %v1040
    %v1042 = vpop.f32.mrf.mxu0
    %v1043 = vadd.f32 %v464, %v1042
    %1044 = vmatmul.bf16.gmra.mxu0 %v738
    %v1045 = vpop.f32.mrf.mxu0
    %v1046 = vadd.f32 %v469, %v1045
    %v1047 = vpop.f32.mrf.mxu0
    %v1048 = vadd.f32 %v474, %v1047
    %1049 = vmatmul.bf16.gmra.mxu0 %v740
    %v1050 = vpop.f32.mrf.mxu0
    %v1051 = vadd.f32 %v479, %v1050
    %v1052 = vpop.f32.mrf.mxu0
    %v1053 = vadd.f32 %v484, %v1052
    %1054 = vdwg.mxu0
    %1055 = vmatpush.bf16.xpose.msra.mxu0 %v869
    %1056 = vmatpush.bf16.xpose.msra.mxu0 %v867
    %1057 = vmatpush.bf16.xpose.msra.mxu0 %v865
    %1058 = vmatpush.bf16.xpose.msra.mxu0 %v863
    %1059 = vmatpush.bf16.xpose.msra.mxu0 %v861
    %1060 = vmatpush.bf16.xpose.msra.mxu0 %v859
    %1061 = vmatpush.bf16.xpose.msra.mxu0 %v857
    %1062 = vmatpush.bf16.xpose.msra.mxu0 %v855
    %1063 = vmatmul.bf16.gmra.mxu0 %v679
    %v1064 = vpop.f32.mrf.mxu0
    %v1065 = vadd.f32 %v896, %v1064
    %v1066 = vpop.f32.mrf.mxu0
    %v1067 = vadd.f32 %v898, %v1066
    %1068 = vmatmul.bf16.gmra.mxu0 %v681
    %v1069 = vpop.f32.mrf.mxu0
    %v1070 = vadd.f32 %v901, %v1069
    %v1071 = vpop.f32.mrf.mxu0
    %v1072 = vadd.f32 %v903, %v1071
    %1073 = vmatmul.bf16.gmra.mxu0 %v683
    %v1074 = vpop.f32.mrf.mxu0
    %v1075 = vadd.f32 %v906, %v1074
    %v1076 = vpop.f32.mrf.mxu0
    %v1077 = vadd.f32 %v908, %v1076
    %1078 = vmatmul.bf16.gmra.mxu0 %v685
    %v1079 = vpop.f32.mrf.mxu0
    %v1080 = vadd.f32 %v911, %v1079
    %v1081 = vpop.f32.mrf.mxu0
    %v1082 = vadd.f32 %v913, %v1081
    %1083 = vmatmul.bf16.gmra.mxu0 %v687
    %v1084 = vpop.f32.mrf.mxu0
    %v1085 = vadd.f32 %v916, %v1084
    %v1086 = vpop.f32.mrf.mxu0
    %v1087 = vadd.f32 %v918, %v1086
    %1088 = vmatmul.bf16.gmra.mxu0 %v689
    %v1089 = vpop.f32.mrf.mxu0
    %v1090 = vadd.f32 %v921, %v1089
    %v1091 = vpop.f32.mrf.mxu0
    %v1092 = vadd.f32 %v923, %v1091
    %1093 = vmatmul.bf16.gmra.mxu0 %v691
    %v1094 = vpop.f32.mrf.mxu0
    %v1095 = vadd.f32 %v926, %v1094
    %v1096 = vpop.f32.mrf.mxu0
    %v1097 = vadd.f32 %v928, %v1096
    %1098 = vmatmul.bf16.gmra.mxu0 %v693
    %v1099 = vpop.f32.mrf.mxu0
    %v1100 = vadd.f32 %v931, %v1099
    %v1101 = vpop.f32.mrf.mxu0
    %v1102 = vadd.f32 %v933, %v1101
    %1103 = vmatmul.bf16.gmra.mxu0 %v695
    %v1104 = vpop.f32.mrf.mxu0
    %v1105 = vadd.f32 %v936, %v1104
    %v1106 = vpop.f32.mrf.mxu0
    %v1107 = vadd.f32 %v938, %v1106
    %1108 = vmatmul.bf16.gmra.mxu0 %v697
    %v1109 = vpop.f32.mrf.mxu0
    %v1110 = vadd.f32 %v941, %v1109
    %v1111 = vpop.f32.mrf.mxu0
    %v1112 = vadd.f32 %v943, %v1111
    %1113 = vmatmul.bf16.gmra.mxu0 %v699
    %v1114 = vpop.f32.mrf.mxu0
    %v1115 = vadd.f32 %v946, %v1114
    %v1116 = vpop.f32.mrf.mxu0
    %v1117 = vadd.f32 %v948, %v1116
    %1118 = vmatmul.bf16.gmra.mxu0 %v701
    %v1119 = vpop.f32.mrf.mxu0
    %v1120 = vadd.f32 %v951, %v1119
    %v1121 = vpop.f32.mrf.mxu0
    %v1122 = vadd.f32 %v953, %v1121
    %1123 = vmatmul.bf16.gmra.mxu0 %v703
    %v1124 = vpop.f32.mrf.mxu0
    %v1125 = vadd.f32 %v956, %v1124
    %v1126 = vpop.f32.mrf.mxu0
    %v1127 = vadd.f32 %v958, %v1126
    %1128 = vmatmul.bf16.gmra.mxu0 %v705
    %v1129 = vpop.f32.mrf.mxu0
    %v1130 = vadd.f32 %v961, %v1129
    %v1131 = vpop.f32.mrf.mxu0
    %v1132 = vadd.f32 %v963, %v1131
    %1133 = vmatmul.bf16.gmra.mxu0 %v707
    %v1134 = vpop.f32.mrf.mxu0
    %v1135 = vadd.f32 %v966, %v1134
    %v1136 = vpop.f32.mrf.mxu0
    %v1137 = vadd.f32 %v968, %v1136
    %1138 = vmatmul.bf16.gmra.mxu0 %v709
    %v1139 = vpop.f32.mrf.mxu0
    %v1140 = vadd.f32 %v971, %v1139
    %v1141 = vpop.f32.mrf.mxu0
    %v1142 = vadd.f32 %v973, %v1141
    %1143 = vmatmul.bf16.gmra.mxu0 %v711
    %v1144 = vpop.f32.mrf.mxu0
    %v1145 = vadd.f32 %v976, %v1144
    %v1146 = vpop.f32.mrf.mxu0
    %v1147 = vadd.f32 %v978, %v1146
    %1148 = vmatmul.bf16.gmra.mxu0 %v713
    %v1149 = vpop.f32.mrf.mxu0
    %v1150 = vadd.f32 %v981, %v1149
    %v1151 = vpop.f32.mrf.mxu0
    %v1152 = vadd.f32 %v983, %v1151
    %1153 = vmatmul.bf16.gmra.mxu0 %v715
    %v1154 = vpop.f32.mrf.mxu0
    %v1155 = vadd.f32 %v986, %v1154
    %v1156 = vpop.f32.mrf.mxu0
    %v1157 = vadd.f32 %v988, %v1156
    %1158 = vmatmul.bf16.gmra.mxu0 %v717
    %v1159 = vpop.f32.mrf.mxu0
    %v1160 = vadd.f32 %v991, %v1159
    %v1161 = vpop.f32.mrf.mxu0
    %v1162 = vadd.f32 %v993, %v1161
    %1163 = vmatmul.bf16.gmra.mxu0 %v719
    %v1164 = vpop.f32.mrf.mxu0
    %v1165 = vadd.f32 %v996, %v1164
    %v1166 = vpop.f32.mrf.mxu0
    %v1167 = vadd.f32 %v998, %v1166
    %1168 = vmatmul.bf16.gmra.mxu0 %v721
    %v1169 = vpop.f32.mrf.mxu0
    %v1170 = vadd.f32 %v1001, %v1169
    %v1171 = vpop.f32.mrf.mxu0
    %v1172 = vadd.f32 %v1003, %v1171
    %1173 = vmatmul.bf16.gmra.mxu0 %v723
    %v1174 = vpop.f32.mrf.mxu0
    %v1175 = vadd.f32 %v1006, %v1174
    %v1176 = vpop.f32.mrf.mxu0
    %v1177 = vadd.f32 %v1008, %v1176
    %1178 = vmatmul.bf16.gmra.mxu0 %v725
    %v1179 = vpop.f32.mrf.mxu0
    %v1180 = vadd.f32 %v1011, %v1179
    %v1181 = vpop.f32.mrf.mxu0
    %v1182 = vadd.f32 %v1013, %v1181
    %1183 = vmatmul.bf16.gmra.mxu0 %v727
    %v1184 = vpop.f32.mrf.mxu0
    %v1185 = vadd.f32 %v1016, %v1184
    %v1186 = vpop.f32.mrf.mxu0
    %v1187 = vadd.f32 %v1018, %v1186
    %1188 = vmatmul.bf16.gmra.mxu0 %v729
    %v1189 = vpop.f32.mrf.mxu0
    %v1190 = vadd.f32 %v1021, %v1189
    %v1191 = vpop.f32.mrf.mxu0
    %v1192 = vadd.f32 %v1023, %v1191
    %1193 = vmatmul.bf16.gmra.mxu0 %v731
    %v1194 = vpop.f32.mrf.mxu0
    %v1195 = vadd.f32 %v1026, %v1194
    %v1196 = vpop.f32.mrf.mxu0
    %v1197 = vadd.f32 %v1028, %v1196
    %1198 = vmatmul.bf16.gmra.mxu0 %v733
    %v1199 = vpop.f32.mrf.mxu0
    %v1200 = vadd.f32 %v1031, %v1199
    %v1201 = vpop.f32.mrf.mxu0
    %v1202 = vadd.f32 %v1033, %v1201
    %1203 = vmatmul.bf16.gmra.mxu0 %v735
    %v1204 = vpop.f32.mrf.mxu0
    %v1205 = vadd.f32 %v1036, %v1204
    %v1206 = vpop.f32.mrf.mxu0
    %v1207 = vadd.f32 %v1038, %v1206
    %1208 = vmatmul.bf16.gmra.mxu0 %v737
    %v1209 = vpop.f32.mrf.mxu0
    %v1210 = vadd.f32 %v1041, %v1209
    %v1211 = vpop.f32.mrf.mxu0
    %v1212 = vadd.f32 %v1043, %v1211
    %1213 = vmatmul.bf16.gmra.mxu0 %v739
    %v1214 = vpop.f32.mrf.mxu0
    %v1215 = vadd.f32 %v1046, %v1214
    %v1216 = vpop.f32.mrf.mxu0
    %v1217 = vadd.f32 %v1048, %v1216
    %1218 = vmatmul.bf16.gmra.mxu0 %v741
    %v1219 = vpop.f32.mrf.mxu0
    %v1220 = vadd.f32 %v1051, %v1219
    %v1221 = vpop.f32.mrf.mxu0
    %v1222 = vadd.f32 %v1053, %v1221
    %1223 = vdwg.mxu0
    %v1224 = vmax.f32 %v1065, 0.0
    %v1225 = vmax.f32 %v1067, 0.0
    %v1226 = vmax.f32 %v1070, 0.0
    %v1227 = vmax.f32 %v1072, 0.0
    %v1228 = vmax.f32 %v1075, 0.0
    %v1229 = vmax.f32 %v1077, 0.0
    %v1230 = vmax.f32 %v1080, 0.0
    %v1231 = vmax.f32 %v1082, 0.0
    %v1232 = vmax.f32 %v1085, 0.0
    %v1233 = vmax.f32 %v1087, 0.0
    %v1234 = vmax.f32 %v1090, 0.0
    %v1235 = vmax.f32 %v1092, 0.0
    %v1236 = vmax.f32 %v1095, 0.0
    %v1237 = vmax.f32 %v1097, 0.0
    %v1238 = vmax.f32 %v1100, 0.0
    %v1239 = vmax.f32 %v1102, 0.0
    %v1240 = vmax.f32 %v1105, 0.0
    %v1241 = vmax.f32 %v1107, 0.0
    %v1242 = vmax.f32 %v1110, 0.0
    %v1243 = vmax.f32 %v1112, 0.0
    %v1244 = vmax.f32 %v1115, 0.0
    %v1245 = vmax.f32 %v1117, 0.0
    %v1246 = vmax.f32 %v1120, 0.0
    %v1247 = vmax.f32 %v1122, 0.0
    %v1248 = vmax.f32 %v1125, 0.0
    %v1249 = vmax.f32 %v1127, 0.0
    %v1250 = vmax.f32 %v1130, 0.0
    %v1251 = vmax.f32 %v1132, 0.0
    %v1252 = vmax.f32 %v1135, 0.0
    %v1253 = vmax.f32 %v1137, 0.0
    %v1254 = vmax.f32 %v1140, 0.0
    %v1255 = vmax.f32 %v1142, 0.0
    %v1256 = vmax.f32 %v1145, 0.0
    %v1257 = vmax.f32 %v1147, 0.0
    %v1258 = vmax.f32 %v1150, 0.0
    %v1259 = vmax.f32 %v1152, 0.0
    %v1260 = vmax.f32 %v1155, 0.0
    %v1261 = vmax.f32 %v1157, 0.0
    %v1262 = vmax.f32 %v1160, 0.0
    %v1263 = vmax.f32 %v1162, 0.0
    %v1264 = vmax.f32 %v1165, 0.0
    %v1265 = vmax.f32 %v1167, 0.0
    %v1266 = vmax.f32 %v1170, 0.0
    %v1267 = vmax.f32 %v1172, 0.0
    %v1268 = vmax.f32 %v1175, 0.0
    %v1269 = vmax.f32 %v1177, 0.0
    %v1270 = vmax.f32 %v1180, 0.0
    %v1271 = vmax.f32 %v1182, 0.0
    %v1272 = vmax.f32 %v1185, 0.0
    %v1273 = vmax.f32 %v1187, 0.0
    %v1274 = vmax.f32 %v1190, 0.0
    %v1275 = vmax.f32 %v1192, 0.0
    %v1276 = vmax.f32 %v1195, 0.0
    %v1277 = vmax.f32 %v1197, 0.0
    %v1278 = vmax.f32 %v1200, 0.0
    %v1279 = vmax.f32 %v1202, 0.0
    %v1280 = vmax.f32 %v1205, 0.0
    %v1281 = vmax.f32 %v1207, 0.0
    %v1282 = vmax.f32 %v1210, 0.0
    %v1283 = vmax.f32 %v1212, 0.0
    %v1284 = vmax.f32 %v1215, 0.0
    %v1285 = vmax.f32 %v1217, 0.0
    %v1286 = vmax.f32 %v1220, 0.0
    %v1287 = vmax.f32 %v1222, 0.0
    %v1288 = vld [vmem:[%s3] sm:$0xff]
    %v1289 = vld [vmem:[%s3 + $0x8] sm:$0xff]
    %v1290 = vld [vmem:[%s3 + $0x10] sm:$0xff]
    %v1291 = vld [vmem:[%s3 + $0x18] sm:$0xff]
    %v1292 = vld [vmem:[%s3 + $0x20] sm:$0xff]
    %v1293 = vld [vmem:[%s3 + $0x28] sm:$0xff]
    %v1294 = vld [vmem:[%s3 + $0x30] sm:$0xff]
    %v1295 = vld [vmem:[%s3 + $0x38] sm:$0xff]
    %v1296 = vld [vmem:[%s3 + $0x40] sm:$0xff]
    %v1297 = vld [vmem:[%s3 + $0x48] sm:$0xff]
    %v1298 = vld [vmem:[%s3 + $0x50] sm:$0xff]
    %v1299 = vld [vmem:[%s3 + $0x58] sm:$0xff]
    %v1300 = vld [vmem:[%s3 + $0x60] sm:$0xff]
    %v1301 = vld [vmem:[%s3 + $0x68] sm:$0xff]
    %v1302 = vld [vmem:[%s3 + $0x70] sm:$0xff]
    %v1303 = vld [vmem:[%s3 + $0x78] sm:$0xff]
    %v1304 = vld [vmem:[%s3 + $0x80] sm:$0xff]
    %v1305 = vld [vmem:[%s3 + $0x88] sm:$0xff]
    %v1306 = vld [vmem:[%s3 + $0x90] sm:$0xff]
    %v1307 = vld [vmem:[%s3 + $0x98] sm:$0xff]
    %v1308 = vld [vmem:[%s3 + $0xa0] sm:$0xff]
    %v1309 = vld [vmem:[%s3 + $0xa8] sm:$0xff]
    %v1310 = vld [vmem:[%s3 + $0xb0] sm:$0xff]
    %v1311 = vld [vmem:[%s3 + $0xb8] sm:$0xff]
    %v1312 = vld [vmem:[%s3 + $0xc0] sm:$0xff]
    %v1313 = vld [vmem:[%s3 + $0xc8] sm:$0xff]
    %v1314 = vld [vmem:[%s3 + $0xd0] sm:$0xff]
    %v1315 = vld [vmem:[%s3 + $0xd8] sm:$0xff]
    %v1316 = vld [vmem:[%s3 + $0xe0] sm:$0xff]
    %v1317 = vld [vmem:[%s3 + $0xe8] sm:$0xff]
    %v1318 = vld [vmem:[%s3 + $0xf0] sm:$0xff]
    %v1319 = vld [vmem:[%s3 + $0xf8] sm:$0xff]
    %v1320 = vld [vmem:[%s3 + $0x100] sm:$0xff]
    %v1321 = vld [vmem:[%s3 + $0x108] sm:$0xff]
    %v1322 = vld [vmem:[%s3 + $0x110] sm:$0xff]
    %v1323 = vld [vmem:[%s3 + $0x118] sm:$0xff]
    %v1324 = vld [vmem:[%s3 + $0x120] sm:$0xff]
    %v1325 = vld [vmem:[%s3 + $0x128] sm:$0xff]
    %v1326 = vld [vmem:[%s3 + $0x130] sm:$0xff]
    %v1327 = vld [vmem:[%s3 + $0x138] sm:$0xff]
    %v1328 = vld [vmem:[%s3 + $0x140] sm:$0xff]
    %v1329 = vld [vmem:[%s3 + $0x148] sm:$0xff]
    %v1330 = vld [vmem:[%s3 + $0x150] sm:$0xff]
    %v1331 = vld [vmem:[%s3 + $0x158] sm:$0xff]
    %v1332 = vld [vmem:[%s3 + $0x160] sm:$0xff]
    %v1333 = vld [vmem:[%s3 + $0x168] sm:$0xff]
    %v1334 = vld [vmem:[%s3 + $0x170] sm:$0xff]
    %v1335 = vld [vmem:[%s3 + $0x178] sm:$0xff]
    %v1336 = vld [vmem:[%s3 + $0x180] sm:$0xff]
    %v1337 = vld [vmem:[%s3 + $0x188] sm:$0xff]
    %v1338 = vld [vmem:[%s3 + $0x190] sm:$0xff]
    %v1339 = vld [vmem:[%s3 + $0x198] sm:$0xff]
    %v1340 = vld [vmem:[%s3 + $0x1a0] sm:$0xff]
    %v1341 = vld [vmem:[%s3 + $0x1a8] sm:$0xff]
    %v1342 = vld [vmem:[%s3 + $0x1b0] sm:$0xff]
    %v1343 = vld [vmem:[%s3 + $0x1b8] sm:$0xff]
    %v1344 = vld [vmem:[%s3 + $0x1c0] sm:$0xff]
    %v1345 = vld [vmem:[%s3 + $0x1c8] sm:$0xff]
    %v1346 = vld [vmem:[%s3 + $0x1d0] sm:$0xff]
    %v1347 = vld [vmem:[%s3 + $0x1d8] sm:$0xff]
    %v1348 = vld [vmem:[%s3 + $0x1e0] sm:$0xff]
    %v1349 = vld [vmem:[%s3 + $0x1e8] sm:$0xff]
    %v1350 = vld [vmem:[%s3 + $0x1f0] sm:$0xff]
    %v1351 = vld [vmem:[%s3 + $0x1f8] sm:$0xff]
    %1353 = vset.pattern.permute.xlu0 0
    %1354 = vperm.xlu0 %1353, %v1288
    %v1355 = vpop.permute.xlu0 %1354
    %1358 = vset.pattern.permute.xlu0 0
    %1359 = vperm.xlu0 %1358, %v1289
    %v1360 = vpop.permute.xlu0 %1359
    %1363 = vset.pattern.permute.xlu0 0
    %1364 = vperm.xlu0 %1363, %v1290
    %v1365 = vpop.permute.xlu0 %1364
    %1368 = vset.pattern.permute.xlu0 0
    %1369 = vperm.xlu0 %1368, %v1291
    %v1370 = vpop.permute.xlu0 %1369
    %1373 = vset.pattern.permute.xlu0 0
    %1374 = vperm.xlu0 %1373, %v1292
    %v1375 = vpop.permute.xlu0 %1374
    %1378 = vset.pattern.permute.xlu0 0
    %1379 = vperm.xlu0 %1378, %v1293
    %v1380 = vpop.permute.xlu0 %1379
    %1383 = vset.pattern.permute.xlu0 0
    %1384 = vperm.xlu0 %1383, %v1294
    %v1385 = vpop.permute.xlu0 %1384
    %1388 = vset.pattern.permute.xlu0 0
    %1389 = vperm.xlu0 %1388, %v1295
    %v1390 = vpop.permute.xlu0 %1389
    %1393 = vset.pattern.permute.xlu0 0
    %1394 = vperm.xlu0 %1393, %v1296
    %v1395 = vpop.permute.xlu0 %1394
    %1398 = vset.pattern.permute.xlu0 0
    %1399 = vperm.xlu0 %1398, %v1297
    %v1400 = vpop.permute.xlu0 %1399
    %1403 = vset.pattern.permute.xlu0 0
    %1404 = vperm.xlu0 %1403, %v1298
    %v1405 = vpop.permute.xlu0 %1404
    %1408 = vset.pattern.permute.xlu0 0
    %1409 = vperm.xlu0 %1408, %v1299
    %v1410 = vpop.permute.xlu0 %1409
    %1413 = vset.pattern.permute.xlu0 0
    %1414 = vperm.xlu0 %1413, %v1300
    %v1415 = vpop.permute.xlu0 %1414
    %1418 = vset.pattern.permute.xlu0 0
    %1419 = vperm.xlu0 %1418, %v1301
    %v1420 = vpop.permute.xlu0 %1419
    %1423 = vset.pattern.permute.xlu0 0
    %1424 = vperm.xlu0 %1423, %v1302
    %v1425 = vpop.permute.xlu0 %1424
    %1428 = vset.pattern.permute.xlu0 0
    %1429 = vperm.xlu0 %1428, %v1303
    %v1430 = vpop.permute.xlu0 %1429
    %1433 = vset.pattern.permute.xlu0 0
    %1434 = vperm.xlu0 %1433, %v1304
    %v1435 = vpop.permute.xlu0 %1434
    %1438 = vset.pattern.permute.xlu0 0
    %1439 = vperm.xlu0 %1438, %v1305
    %v1440 = vpop.permute.xlu0 %1439
    %1443 = vset.pattern.permute.xlu0 0
    %1444 = vperm.xlu0 %1443, %v1306
    %v1445 = vpop.permute.xlu0 %1444
    %1448 = vset.pattern.permute.xlu0 0
    %1449 = vperm.xlu0 %1448, %v1307
    %v1450 = vpop.permute.xlu0 %1449
    %1453 = vset.pattern.permute.xlu0 0
    %1454 = vperm.xlu0 %1453, %v1308
    %v1455 = vpop.permute.xlu0 %1454
    %1458 = vset.pattern.permute.xlu0 0
    %1459 = vperm.xlu0 %1458, %v1309
    %v1460 = vpop.permute.xlu0 %1459
    %1463 = vset.pattern.permute.xlu0 0
    %1464 = vperm.xlu0 %1463, %v1310
    %v1465 = vpop.permute.xlu0 %1464
    %1468 = vset.pattern.permute.xlu0 0
    %1469 = vperm.xlu0 %1468, %v1311
    %v1470 = vpop.permute.xlu0 %1469
    %1473 = vset.pattern.permute.xlu0 0
    %1474 = vperm.xlu0 %1473, %v1312
    %v1475 = vpop.permute.xlu0 %1474
    %1478 = vset.pattern.permute.xlu0 0
    %1479 = vperm.xlu0 %1478, %v1313
    %v1480 = vpop.permute.xlu0 %1479
    %1483 = vset.pattern.permute.xlu0 0
    %1484 = vperm.xlu0 %1483, %v1314
    %v1485 = vpop.permute.xlu0 %1484
    %1488 = vset.pattern.permute.xlu0 0
    %1489 = vperm.xlu0 %1488, %v1315
    %v1490 = vpop.permute.xlu0 %1489
    %1493 = vset.pattern.permute.xlu0 0
    %1494 = vperm.xlu0 %1493, %v1316
    %v1495 = vpop.permute.xlu0 %1494
    %1498 = vset.pattern.permute.xlu0 0
    %1499 = vperm.xlu0 %1498, %v1317
    %v1500 = vpop.permute.xlu0 %1499
    %1503 = vset.pattern.permute.xlu0 0
    %1504 = vperm.xlu0 %1503, %v1318
    %v1505 = vpop.permute.xlu0 %1504
    %1508 = vset.pattern.permute.xlu0 0
    %1509 = vperm.xlu0 %1508, %v1319
    %v1510 = vpop.permute.xlu0 %1509
    %1513 = vset.pattern.permute.xlu0 0
    %1514 = vperm.xlu0 %1513, %v1320
    %v1515 = vpop.permute.xlu0 %1514
    %1518 = vset.pattern.permute.xlu0 0
    %1519 = vperm.xlu0 %1518, %v1321
    %v1520 = vpop.permute.xlu0 %1519
    %1523 = vset.pattern.permute.xlu0 0
    %1524 = vperm.xlu0 %1523, %v1322
    %v1525 = vpop.permute.xlu0 %1524
    %1528 = vset.pattern.permute.xlu0 0
    %1529 = vperm.xlu0 %1528, %v1323
    %v1530 = vpop.permute.xlu0 %1529
    %1533 = vset.pattern.permute.xlu0 0
    %1534 = vperm.xlu0 %1533, %v1324
    %v1535 = vpop.permute.xlu0 %1534
    %1538 = vset.pattern.permute.xlu0 0
    %1539 = vperm.xlu0 %1538, %v1325
    %v1540 = vpop.permute.xlu0 %1539
    %1543 = vset.pattern.permute.xlu0 0
    %1544 = vperm.xlu0 %1543, %v1326
    %v1545 = vpop.permute.xlu0 %1544
    %1548 = vset.pattern.permute.xlu0 0
    %1549 = vperm.xlu0 %1548, %v1327
    %v1550 = vpop.permute.xlu0 %1549
    %1553 = vset.pattern.permute.xlu0 0
    %1554 = vperm.xlu0 %1553, %v1328
    %v1555 = vpop.permute.xlu0 %1554
    %1558 = vset.pattern.permute.xlu0 0
    %1559 = vperm.xlu0 %1558, %v1329
    %v1560 = vpop.permute.xlu0 %1559
    %1563 = vset.pattern.permute.xlu0 0
    %1564 = vperm.xlu0 %1563, %v1330
    %v1565 = vpop.permute.xlu0 %1564
    %1568 = vset.pattern.permute.xlu0 0
    %1569 = vperm.xlu0 %1568, %v1331
    %v1570 = vpop.permute.xlu0 %1569
    %1573 = vset.pattern.permute.xlu0 0
    %1574 = vperm.xlu0 %1573, %v1332
    %v1575 = vpop.permute.xlu0 %1574
    %1578 = vset.pattern.permute.xlu0 0
    %1579 = vperm.xlu0 %1578, %v1333
    %v1580 = vpop.permute.xlu0 %1579
    %1583 = vset.pattern.permute.xlu0 0
    %1584 = vperm.xlu0 %1583, %v1334
    %v1585 = vpop.permute.xlu0 %1584
    %1588 = vset.pattern.permute.xlu0 0
    %1589 = vperm.xlu0 %1588, %v1335
    %v1590 = vpop.permute.xlu0 %1589
    %1593 = vset.pattern.permute.xlu0 0
    %1594 = vperm.xlu0 %1593, %v1336
    %v1595 = vpop.permute.xlu0 %1594
    %1598 = vset.pattern.permute.xlu0 0
    %1599 = vperm.xlu0 %1598, %v1337
    %v1600 = vpop.permute.xlu0 %1599
    %1603 = vset.pattern.permute.xlu0 0
    %1604 = vperm.xlu0 %1603, %v1338
    %v1605 = vpop.permute.xlu0 %1604
    %1608 = vset.pattern.permute.xlu0 0
    %1609 = vperm.xlu0 %1608, %v1339
    %v1610 = vpop.permute.xlu0 %1609
    %1613 = vset.pattern.permute.xlu0 0
    %1614 = vperm.xlu0 %1613, %v1340
    %v1615 = vpop.permute.xlu0 %1614
    %1618 = vset.pattern.permute.xlu0 0
    %1619 = vperm.xlu0 %1618, %v1341
    %v1620 = vpop.permute.xlu0 %1619
    %1623 = vset.pattern.permute.xlu0 0
    %1624 = vperm.xlu0 %1623, %v1342
    %v1625 = vpop.permute.xlu0 %1624
    %1628 = vset.pattern.permute.xlu0 0
    %1629 = vperm.xlu0 %1628, %v1343
    %v1630 = vpop.permute.xlu0 %1629
    %1633 = vset.pattern.permute.xlu0 0
    %1634 = vperm.xlu0 %1633, %v1344
    %v1635 = vpop.permute.xlu0 %1634
    %1638 = vset.pattern.permute.xlu0 0
    %1639 = vperm.xlu0 %1638, %v1345
    %v1640 = vpop.permute.xlu0 %1639
    %1643 = vset.pattern.permute.xlu0 0
    %1644 = vperm.xlu0 %1643, %v1346
    %v1645 = vpop.permute.xlu0 %1644
    %1648 = vset.pattern.permute.xlu0 0
    %1649 = vperm.xlu0 %1648, %v1347
    %v1650 = vpop.permute.xlu0 %1649
    %1653 = vset.pattern.permute.xlu0 0
    %1654 = vperm.xlu0 %1653, %v1348
    %v1655 = vpop.permute.xlu0 %1654
    %1658 = vset.pattern.permute.xlu0 0
    %1659 = vperm.xlu0 %1658, %v1349
    %v1660 = vpop.permute.xlu0 %1659
    %1663 = vset.pattern.permute.xlu0 0
    %1664 = vperm.xlu0 %1663, %v1350
    %v1665 = vpop.permute.xlu0 %1664
    %1668 = vset.pattern.permute.xlu0 0
    %1669 = vperm.xlu0 %1668, %v1351
    %v1670 = vpop.permute.xlu0 %1669
    %v1672 = vmul.f32 %v1224, %v1355
    %v1673 = vmul.f32 %v1225, %v1360
    %v1674 = vmul.f32 %v1226, %v1365
    %v1675 = vmul.f32 %v1227, %v1370
    %v1676 = vmul.f32 %v1228, %v1375
    %v1677 = vmul.f32 %v1229, %v1380
    %v1678 = vmul.f32 %v1230, %v1385
    %v1679 = vmul.f32 %v1231, %v1390
    %v1680 = vmul.f32 %v1232, %v1395
    %v1681 = vmul.f32 %v1233, %v1400
    %v1682 = vmul.f32 %v1234, %v1405
    %v1683 = vmul.f32 %v1235, %v1410
    %v1684 = vmul.f32 %v1236, %v1415
    %v1685 = vmul.f32 %v1237, %v1420
    %v1686 = vmul.f32 %v1238, %v1425
    %v1687 = vmul.f32 %v1239, %v1430
    %v1688 = vmul.f32 %v1240, %v1435
    %v1689 = vmul.f32 %v1241, %v1440
    %v1690 = vmul.f32 %v1242, %v1445
    %v1691 = vmul.f32 %v1243, %v1450
    %v1692 = vmul.f32 %v1244, %v1455
    %v1693 = vmul.f32 %v1245, %v1460
    %v1694 = vmul.f32 %v1246, %v1465
    %v1695 = vmul.f32 %v1247, %v1470
    %v1696 = vmul.f32 %v1248, %v1475
    %v1697 = vmul.f32 %v1249, %v1480
    %v1698 = vmul.f32 %v1250, %v1485
    %v1699 = vmul.f32 %v1251, %v1490
    %v1700 = vmul.f32 %v1252, %v1495
    %v1701 = vmul.f32 %v1253, %v1500
    %v1702 = vmul.f32 %v1254, %v1505
    %v1703 = vmul.f32 %v1255, %v1510
    %v1704 = vmul.f32 %v1256, %v1515
    %v1705 = vmul.f32 %v1257, %v1520
    %v1706 = vmul.f32 %v1258, %v1525
    %v1707 = vmul.f32 %v1259, %v1530
    %v1708 = vmul.f32 %v1260, %v1535
    %v1709 = vmul.f32 %v1261, %v1540
    %v1710 = vmul.f32 %v1262, %v1545
    %v1711 = vmul.f32 %v1263, %v1550
    %v1712 = vmul.f32 %v1264, %v1555
    %v1713 = vmul.f32 %v1265, %v1560
    %v1714 = vmul.f32 %v1266, %v1565
    %v1715 = vmul.f32 %v1267, %v1570
    %v1716 = vmul.f32 %v1268, %v1575
    %v1717 = vmul.f32 %v1269, %v1580
    %v1718 = vmul.f32 %v1270, %v1585
    %v1719 = vmul.f32 %v1271, %v1590
    %v1720 = vmul.f32 %v1272, %v1595
    %v1721 = vmul.f32 %v1273, %v1600
    %v1722 = vmul.f32 %v1274, %v1605
    %v1723 = vmul.f32 %v1275, %v1610
    %v1724 = vmul.f32 %v1276, %v1615
    %v1725 = vmul.f32 %v1277, %v1620
    %v1726 = vmul.f32 %v1278, %v1625
    %v1727 = vmul.f32 %v1279, %v1630
    %v1728 = vmul.f32 %v1280, %v1635
    %v1729 = vmul.f32 %v1281, %v1640
    %v1730 = vmul.f32 %v1282, %v1645
    %v1731 = vmul.f32 %v1283, %v1650
    %v1732 = vmul.f32 %v1284, %v1655
    %v1733 = vmul.f32 %v1285, %v1660
    %v1734 = vmul.f32 %v1286, %v1665
    %v1735 = vmul.f32 %v1287, %v1670
    %v1736 = vadd.f32 %v1672, %v1673
    %v1737 = vadd.f32 %v1736, %v1674
    %v1738 = vadd.f32 %v1737, %v1675
    %v1739 = vadd.f32 %v1738, %v1676
    %v1740 = vadd.f32 %v1739, %v1677
    %v1741 = vadd.f32 %v1740, %v1678
    %v1742 = vadd.f32 %v1741, %v1679
    %v1743 = vadd.f32 %v1742, %v1680
    %v1744 = vadd.f32 %v1743, %v1681
    %v1745 = vadd.f32 %v1744, %v1682
    %v1746 = vadd.f32 %v1745, %v1683
    %v1747 = vadd.f32 %v1746, %v1684
    %v1748 = vadd.f32 %v1747, %v1685
    %v1749 = vadd.f32 %v1748, %v1686
    %v1750 = vadd.f32 %v1749, %v1687
    %v1751 = vadd.f32 %v1750, %v1688
    %v1752 = vadd.f32 %v1751, %v1689
    %v1753 = vadd.f32 %v1752, %v1690
    %v1754 = vadd.f32 %v1753, %v1691
    %v1755 = vadd.f32 %v1754, %v1692
    %v1756 = vadd.f32 %v1755, %v1693
    %v1757 = vadd.f32 %v1756, %v1694
    %v1758 = vadd.f32 %v1757, %v1695
    %v1759 = vadd.f32 %v1758, %v1696
    %v1760 = vadd.f32 %v1759, %v1697
    %v1761 = vadd.f32 %v1760, %v1698
    %v1762 = vadd.f32 %v1761, %v1699
    %v1763 = vadd.f32 %v1762, %v1700
    %v1764 = vadd.f32 %v1763, %v1701
    %v1765 = vadd.f32 %v1764, %v1702
    %v1766 = vadd.f32 %v1765, %v1703
    %v1767 = vadd.f32 %v1766, %v1704
    %v1768 = vadd.f32 %v1767, %v1705
    %v1769 = vadd.f32 %v1768, %v1706
    %v1770 = vadd.f32 %v1769, %v1707
    %v1771 = vadd.f32 %v1770, %v1708
    %v1772 = vadd.f32 %v1771, %v1709
    %v1773 = vadd.f32 %v1772, %v1710
    %v1774 = vadd.f32 %v1773, %v1711
    %v1775 = vadd.f32 %v1774, %v1712
    %v1776 = vadd.f32 %v1775, %v1713
    %v1777 = vadd.f32 %v1776, %v1714
    %v1778 = vadd.f32 %v1777, %v1715
    %v1779 = vadd.f32 %v1778, %v1716
    %v1780 = vadd.f32 %v1779, %v1717
    %v1781 = vadd.f32 %v1780, %v1718
    %v1782 = vadd.f32 %v1781, %v1719
    %v1783 = vadd.f32 %v1782, %v1720
    %v1784 = vadd.f32 %v1783, %v1721
    %v1785 = vadd.f32 %v1784, %v1722
    %v1786 = vadd.f32 %v1785, %v1723
    %v1787 = vadd.f32 %v1786, %v1724
    %v1788 = vadd.f32 %v1787, %v1725
    %v1789 = vadd.f32 %v1788, %v1726
    %v1790 = vadd.f32 %v1789, %v1727
    %v1791 = vadd.f32 %v1790, %v1728
    %v1792 = vadd.f32 %v1791, %v1729
    %v1793 = vadd.f32 %v1792, %v1730
    %v1794 = vadd.f32 %v1793, %v1731
    %v1795 = vadd.f32 %v1794, %v1732
    %v1796 = vadd.f32 %v1795, %v1733
    %v1797 = vadd.f32 %v1796, %v1734
    %v1798 = vadd.f32 %v1797, %v1735
    %v1799 = vrot.slane %v1798, 4
    %v1800 = vadd.f32 %v1798, %v1799
    %v1801 = vrot.slane %v1800, 2
    %v1802 = vadd.f32 %v1800, %v1801
    %v1803 = vrot.slane %v1802, 1
    %v1804 = vadd.f32 %v1802, %v1803
    %s1805 = sld [smem:[#allocation2]]
    %v1806 = vstv %s1805
    %v1807 = vadd.f32 %v1804, %v1806
    %v1808 = vxor.u32 %v1807, 2147483648
    %v1809 = vmul.f32 %v1808, 1.442695
    %v1810 = vpow.pop %v1809
    %v1811 = vadd.f32 %v1810, 1.0
    %v1812 = vrcp.pop %v1811
    %v1813 = vmul.f32 %v1811, %v1812
    %v1814 = vsub.f32 1.0, %v1813
    %v1815 = vmul.f32 %v1812, %v1814
    %v1816 = vadd.f32 %v1812, %v1815
    %vm1817 = vweird.f32 %v1811
    %vm1818 = vweird.f32 %v1812
    %vm1819 = vmor %vm1817, %vm1818
    %v1820 = vsel %vm1819, %v1812, %v1816
    %v1821 = vand.u32 2147483647, %v1811
    %vm1822 = vcmp.eq.f32.partialorder %v1821, 8.507059e+37
    %v1823 = vand.u32 %v1811, 2147483648
    %v1824 = vor.u32 1.1754944e-38, %v1823
    %v1825 = vsel %vm1822, %v1824, %v1820
    %v1826 = vmul.f32 1.0, %v1825
    %1827 = vst [vmem:[#allocation3] sm:$0x1] %v1826
    // Predicated region
    $region22: #{tpu_custom_call.1} parent=1 // pred_check
      _
    $region23: #{tpu_custom_call.1} parent=1 // pred_check_branch
      %1829 = sbr.rel (0) target = $region25
    $region24: #{tpu_custom_call.1} parent=1 // pred_region
      %1831 = vsyncadd [#allocation4], 0
      %s1833 = sshll.u32 [#allocation3], 4
      %s1834 = int_to_ptr.vmem [resolvable:$true] %s1833
      %s1835 = sshll.u32 %s5, 4
      %s1836 = int_to_ptr.hbm [resolvable:$true] %s1835
      %1838 = dma.vmem_to_hbm [thread:$0]  %s1834, 16, %s1836, [#allocation4]
    $region25: #{tpu_custom_call.1} parent=1 // pred_fallthru
      _
    // Predicated region
    $region26: #{tpu_custom_call.1} parent=1 // pred_check
      _
    $region27: #{tpu_custom_call.1} parent=1 // pred_check_branch
      %1840 = sbr.rel (0) target = $region29
    $region28: #{tpu_custom_call.1} parent=1 // pred_region
      %1842 = dma.done [#allocation4], 16
    $region29: #{tpu_custom_call.1} parent=1 // pred_fallthru
      _
    %1843 = vsyncpa [#allocation4], 1

</llo_original>
